<compile_context>
chip_gen: v7x
topology: tpu7x:2x2x1
jax: 0.10.0
libtpu: 0.0.40
codegen_flags: <defaults>
</compile_context>

<pallas_src>
import functools

import jax
import jax.numpy as jnp
from jax.experimental import pallas as pl
from jax.experimental.pallas import tpu as pltpu


def _round_up(x, m):
    return (x + m - 1) // m * m


def _pick_batch_tile(batch, s_pad, h_pad, itemsize, budget_bytes=8 * 1024 * 1024):
    """Largest batch tile whose double-buffered x block fits a safe VMEM budget.

    8 MiB per double-buffered x tile keeps total VMEM use far below even the
    v7x 64 MiB capacity (32 MiB default scoped limit), so the same tile choice
    works on v5e / v6e / v7x.
    """
    per_row = 2 * s_pad * h_pad * itemsize  # double-buffered by the pipeline
    max_tb = max(1, budget_bytes // per_row)
    if batch <= max_tb:
        return batch  # one (or few) fat grid steps; block == full batch dim
    tb = min(max_tb, 128)
    tb = max(8, (tb // 8) * 8)  # keep the output-block leading dim 8-aligned
    return tb


def _attn_kernel(x_ref, wa_ref, ba_ref, wc_ref, v_ref, alpha_ref,
                 *, seq_len, mxu_dtype):
    # x_ref:     (TB, S_pad, H_pad)
    # wa_ref:    (H_pad, A_pad)
    # ba_ref:    (1, A_pad)
    # wc_ref:    (1, A_pad)
    # v_ref:     (TB, H_pad)      lane-dense output
    # alpha_ref: (TB, S_pad)      lane-dense output (f32)
    tb, s_pad, h_pad = x_ref.shape
    a_pad = wa_ref.shape[1]

    x = x_ref[...].astype(jnp.float32)            # (TB, S, H), f32 for accum
    x2 = x.reshape(tb * s_pad, h_pad)             # fat M for the MXU

    # u = tanh(x @ Wa + ba)  -- single MXU pass with M = TB*S.
    lhs = x2 if mxu_dtype is None else x2.astype(mxu_dtype)
    rhs = wa_ref[...] if mxu_dtype is None else wa_ref[...].astype(mxu_dtype)
    u = jnp.tanh(
        jnp.dot(lhs, rhs, preferred_element_type=jnp.float32)
        + ba_ref[...]
    )                                             # (TB*S, A), f32

    # Context-vector scores: VPU multiply + lane reduce (no N=1 MXU pass).
    u3 = u.reshape(tb, s_pad, a_pad)
    scores = jnp.sum(u3 * wc_ref[...].reshape(1, 1, a_pad), axis=-1)  # (TB, S)

    # Mask padded sequence positions (static, only emitted when needed).
    if seq_len < s_pad:
        col = jax.lax.broadcasted_iota(jnp.int32, (tb, s_pad), 1)
        scores = jnp.where(col < seq_len, scores, jnp.float32(-1e30))

    # Softmax over the sequence axis (lane axis of the (TB, S) layout).
    m = jnp.max(scores, axis=-1, keepdims=True)
    e = jnp.exp(scores - m)
    denom = jnp.sum(e, axis=-1, keepdims=True)
    # approx=True would move this fully onto the EUP estimate path; kept exact
    # here so alpha sums to 1 within tight tolerances.
    alpha = e * pl.reciprocal(denom, approx=False)                    # (TB, S)

    # v = sum_s alpha[b, s] * x[b, s, :]
    v = jnp.sum(alpha[:, :, None] * x, axis=1)                        # (TB, H)

    v_ref[...] = v.astype(v_ref.dtype)
    alpha_ref[...] = alpha.astype(alpha_ref.dtype)


def attn_module_forward(x, wa, ba, wc, use_attention=True, mxu_dtype=None):
    """Pallas implementation of AttnModule.forward.

    x:  (B, S, H)
    wa: (H, A), ba: (A,) or (1, A), wc: (1, A) / (A,) / (A, 1)
    mxu_dtype: optional dtype (e.g. jnp.bfloat16 on v6e/v7x) for the MXU feed;
               softmax / accumulation stay in f32.
    Returns (v, alpha) with shapes (B, H), (B, S); alpha is float32.
    """
    B, S, H = x.shape
    A = wa.shape[1]

    if not use_attention:
        # TODO(synk): mean-pooling branch kept in plain JAX (no attention params).
        return jnp.mean(x, axis=1), None

    # Pad to TPU-friendly shapes: lanes (128) for H/A, sublanes (8) for S.
    s_pad = _round_up(S, 8)
    h_pad = _round_up(H, 128)
    a_pad = _round_up(A, 128)

    tb = _pick_batch_tile(B, s_pad, h_pad, jnp.dtype(x.dtype).itemsize)
    b_pad = _round_up(B, tb)

    x_p = jnp.pad(x, ((0, b_pad - B), (0, s_pad - S), (0, h_pad - H)))
    wa_p = jnp.pad(wa, ((0, h_pad - H), (0, a_pad - A)))
    ba_p = jnp.pad(jnp.reshape(ba, (1, A)), ((0, 0), (0, a_pad - A)))
    wc_p = jnp.pad(jnp.reshape(wc, (1, A)), ((0, 0), (0, a_pad - A)))

    kernel = functools.partial(_attn_kernel, seq_len=S, mxu_dtype=mxu_dtype)

    v_p, alpha_p = pl.pallas_call(
        kernel,
        out_shape=(
            jax.ShapeDtypeStruct((b_pad, h_pad), x.dtype),     # v
            jax.ShapeDtypeStruct((b_pad, s_pad), jnp.float32),  # alpha (f32)
        ),
        grid=(b_pad // tb,),
        in_specs=[
            pl.BlockSpec((tb, s_pad, h_pad), lambda b: (b, 0, 0)),  # x
            pl.BlockSpec((h_pad, a_pad), lambda b: (0, 0)),         # Wa
            pl.BlockSpec((1, a_pad), lambda b: (0, 0)),             # ba
            pl.BlockSpec((1, a_pad), lambda b: (0, 0)),             # wc
        ],
        out_specs=(
            pl.BlockSpec((tb, h_pad), lambda b: (b, 0)),            # v
            pl.BlockSpec((tb, s_pad), lambda b: (b, 0)),            # alpha
        ),
        compiler_params=pltpu.CompilerParams(
            dimension_semantics=("parallel",),   # batch axis shards across TCs on v7x
        ),
    )(x_p, wa_p, ba_p, wc_p)

    return v_p[:B, :H], alpha_p[:B, :S]


def _reference_forward(x, wa, ba, wc):
    """Pure-JAX reference mirroring the PyTorch module."""
    u = jnp.tanh(jnp.einsum("bsh,ha->bsa", x, wa) + jnp.reshape(ba, (1, 1, -1)))
    scores = jnp.einsum("bsa,a->bs", u, jnp.reshape(wc, (-1,)))
    alpha = jax.nn.softmax(scores, axis=1)
    v = jnp.sum(alpha[..., None] * x, axis=1)
    return v, alpha


if __name__ == "__main__":
    # Small shapes consistent with the module: batch=2, seq=8, hidden=32, attn=16.
    B, S, H, A = 2, 8, 32, 16

    key = jax.random.PRNGKey(0)
    kx, kwa, kba, kwc = jax.random.split(key, 4)

    x = jax.random.normal(kx, (B, S, H), dtype=jnp.float32)

    # Deterministic parameter init (uniform, roughly like nn.Linear defaults).
    bound_a = 1.0 / (H ** 0.5)
    wa = jax.random.uniform(kwa, (H, A), jnp.float32, -bound_a, bound_a)
    ba = jax.random.uniform(kba, (A,), jnp.float32, -bound_a, bound_a)
    bound_c = 1.0 / (A ** 0.5)
    wc = jax.random.uniform(kwc, (1, A), jnp.float32, -bound_c, bound_c)

    # (On v6e/v7x, pass mxu_dtype=jnp.bfloat16 for ~2x MXU throughput; kept f32
    # here so the 1e-5 correctness checks below stay meaningful.)
    v, alpha = attn_module_forward(x, wa, ba, wc, use_attention=True)
    v, alpha = jax.block_until_ready((v, alpha))

    v_ref, alpha_ref = _reference_forward(x, wa, ba, wc)
    assert v.shape == (B, H) and alpha.shape == (B, S)
    assert jnp.allclose(v, v_ref, atol=1e-5, rtol=1e-5)
    assert jnp.allclose(alpha, alpha_ref, atol=1e-5, rtol=1e-5)
    assert jnp.allclose(jnp.sum(alpha, axis=1), 1.0, atol=1e-5)

    # Also exercise the non-attention branch (plain JAX mean-pool).
    v_mean, none_alpha = attn_module_forward(x, wa, ba, wc, use_attention=False)
    v_mean = jax.block_until_ready(v_mean)
    assert none_alpha is None
    assert jnp.allclose(v_mean, jnp.mean(x, axis=1), atol=1e-6)

    print("KERNEL_OK")
</pallas_src>

<mosaic_0001>
module attributes {stable_mosaic.version = 11 : i64} {
  func.func @_attn_kernel(%arg0: i32, %arg1: memref<2x8x128xf32, #tpu.memory_space<vmem>>, %arg2: memref<128x128xf32, #tpu.memory_space<vmem>>, %arg3: memref<1x128xf32, #tpu.memory_space<vmem>>, %arg4: memref<1x128xf32, #tpu.memory_space<vmem>>, %arg5: memref<2x128xf32, #tpu.memory_space<vmem>>, %arg6: memref<2x8xf32, #tpu.memory_space<vmem>>) attributes {dimension_semantics = [#tpu.dimension_semantics<parallel>], iteration_bounds = array<i64: 1>, scalar_prefetch = 0 : i64, scratch_operands = 0 : i64, tpu.core_type = #tpu.core_type<tc>, window_params = [{transform_indices = @transform_0, window_bounds = array<i64: 2, 8, 128>}, {pipeline_mode = #tpu.pipeline_mode<synchronous>, transform_indices = @transform_1, window_bounds = array<i64: 128, 128>}, {pipeline_mode = #tpu.pipeline_mode<synchronous>, transform_indices = @transform_2, window_bounds = array<i64: 1, 128>}, {pipeline_mode = #tpu.pipeline_mode<synchronous>, transform_indices = @transform_3, window_bounds = array<i64: 1, 128>}, {transform_indices = @transform_4, window_bounds = array<i64: 2, 128>}, {transform_indices = @transform_5, window_bounds = array<i64: 2, 8>}]} {
    %c0 = arith.constant 0 : index
    %c0_0 = arith.constant 0 : index
    %c0_1 = arith.constant 0 : index
    %0 = vector.load %arg1[%c0, %c0_0, %c0_1] : memref<2x8x128xf32, #tpu.memory_space<vmem>>, vector<2x8x128xf32>
    %1 = vector.shape_cast %0 : vector<2x8x128xf32> to vector<16x128xf32>
    %c0_2 = arith.constant 0 : index
    %c0_3 = arith.constant 0 : index
    %2 = vector.load %arg2[%c0_2, %c0_3] : memref<128x128xf32, #tpu.memory_space<vmem>>, vector<128x128xf32>
    %cst = arith.constant dense<0.000000e+00> : vector<16x128xf32>
    %3 = tpu.matmul %1, %2, %cst {dimension_numbers = #tpu.dot_dimension_numbers<[1], [0], [0], [1], [0, 0, 1, 1], [], []>} : vector<16x128xf32>, vector<128x128xf32>, vector<16x128xf32> -> vector<16x128xf32>
    %c0_4 = arith.constant 0 : index
    %c0_5 = arith.constant 0 : index
    %4 = vector.load %arg3[%c0_4, %c0_5] : memref<1x128xf32, #tpu.memory_space<vmem>>, vector<1x128xf32>
    %5 = vector.broadcast %4 : vector<1x128xf32> to vector<16x128xf32>
    %6 = arith.addf %3, %5 : vector<16x128xf32>
    %7 = math.tanh %6 : vector<16x128xf32>
    %8 = vector.shape_cast %7 : vector<16x128xf32> to vector<2x8x128xf32>
    %c0_6 = arith.constant 0 : index
    %c0_7 = arith.constant 0 : index
    %9 = vector.load %arg4[%c0_6, %c0_7] : memref<1x128xf32, #tpu.memory_space<vmem>>, vector<1x128xf32>
    %10 = vector.shape_cast %9 : vector<1x128xf32> to vector<1x1x128xf32>
    %11 = vector.broadcast %10 : vector<1x1x128xf32> to vector<2x8x128xf32>
    %12 = arith.mulf %8, %11 : vector<2x8x128xf32>
    %cst_8 = arith.constant dense<0.000000e+00> : vector<2x8xf32>
    %13 = vector.multi_reduction <add>, %12, %cst_8 [2] : vector<2x8x128xf32> to vector<2x8xf32>
    %cst_9 = arith.constant dense<0xFF800000> : vector<2xf32>
    %14 = vector.multi_reduction <maximumf>, %13, %cst_9 [1] : vector<2x8xf32> to vector<2xf32>
    %15 = vector.shape_cast %14 : vector<2xf32> to vector<2x1xf32>
    %16 = vector.broadcast %15 : vector<2x1xf32> to vector<2x8xf32>
    %17 = arith.subf %13, %16 : vector<2x8xf32>
    %18 = math.exp %17 : vector<2x8xf32>
    %cst_10 = arith.constant dense<0.000000e+00> : vector<2xf32>
    %19 = vector.multi_reduction <add>, %18, %cst_10 [1] : vector<2x8xf32> to vector<2xf32>
    %20 = vector.shape_cast %19 : vector<2xf32> to vector<2x1xf32>
    %21 = tpu.reciprocal %20 : vector<2x1xf32> -> vector<2x1xf32>
    %22 = vector.broadcast %21 : vector<2x1xf32> to vector<2x8xf32>
    %23 = arith.mulf %18, %22 : vector<2x8xf32>
    %24 = vector.shape_cast %23 : vector<2x8xf32> to vector<2x8x1xf32>
    %25 = vector.broadcast %24 : vector<2x8x1xf32> to vector<2x8x128xf32>
    %26 = arith.mulf %25, %0 : vector<2x8x128xf32>
    %cst_11 = arith.constant dense<0.000000e+00> : vector<2x128xf32>
    %27 = vector.multi_reduction <add>, %26, %cst_11 [1] : vector<2x8x128xf32> to vector<2x128xf32>
    %c0_12 = arith.constant 0 : index
    %c0_13 = arith.constant 0 : index
    %28 = vector.load %arg5[%c0_12, %c0_13] : memref<2x128xf32, #tpu.memory_space<vmem>>, vector<2x128xf32>
    tpu.vector_store %arg5[%c0_12, %c0_13], %27 {strides = array<i32>} : memref<2x128xf32, #tpu.memory_space<vmem>>, vector<2x128xf32>,
    %c0_14 = arith.constant 0 : index
    %c0_15 = arith.constant 0 : index
    %29 = vector.load %arg6[%c0_14, %c0_15] : memref<2x8xf32, #tpu.memory_space<vmem>>, vector<2x8xf32>
    tpu.vector_store %arg6[%c0_14, %c0_15], %23 {strides = array<i32>} : memref<2x8xf32, #tpu.memory_space<vmem>>, vector<2x8xf32>,
    return
  }
  func.func @transform_0(%arg0: i32) -> (i32, i32, i32) {
    %c0_i32 = arith.constant 0 : i32
    %c0_i32_0 = arith.constant 0 : i32
    %c0_i32_1 = arith.constant 0 : i32
    return %arg0, %c0_i32, %c0_i32_0 : i32, i32, i32
  }
  func.func @transform_1(%arg0: i32) -> (i32, i32) {
    %c0_i32 = arith.constant 0 : i32
    %c0_i32_0 = arith.constant 0 : i32
    %c0_i32_1 = arith.constant 0 : i32
    return %c0_i32, %c0_i32_0 : i32, i32
  }
  func.func @transform_2(%arg0: i32) -> (i32, i32) {
    %c0_i32 = arith.constant 0 : i32
    %c0_i32_0 = arith.constant 0 : i32
    %c0_i32_1 = arith.constant 0 : i32
    return %c0_i32, %c0_i32_0 : i32, i32
  }
  func.func @transform_3(%arg0: i32) -> (i32, i32) {
    %c0_i32 = arith.constant 0 : i32
    %c0_i32_0 = arith.constant 0 : i32
    %c0_i32_1 = arith.constant 0 : i32
    return %c0_i32, %c0_i32_0 : i32, i32
  }
  func.func @transform_4(%arg0: i32) -> (i32, i32) {
    %c0_i32 = arith.constant 0 : i32
    %c0_i32_0 = arith.constant 0 : i32
    return %arg0, %c0_i32 : i32, i32
  }
  func.func @transform_5(%arg0: i32) -> (i32, i32) {
    %c0_i32 = arith.constant 0 : i32
    %c0_i32_0 = arith.constant 0 : i32
    return %arg0, %c0_i32 : i32, i32
  }
}

</mosaic_0001>

<llo_original>
// kernel: tpu_custom_call.1
$region0: #{tpu_custom_call.1}
  #allocation0 [shape = 'u32[]', space=smem, size = 0x4, offset = 0x4, fixed_abs, tag = 'smem constant byte address 0x4 - core index']
  #allocation1 [shape = 'u32[144,128]{1,0:T(1,128)}', space=vmem, size = 0x12000, scoped, tag = 'internal scratch']
  %s0 = inlined_call_operand.hbm [shape: f32[2,8,128], index: 0, kind: input, shape index: {}]
  %s1 = inlined_call_operand.hbm [shape: f32[128,128], index: 1, kind: input, shape index: {}]
  %s2 = inlined_call_operand.vmem [shape: f32[1,128], index: 2, kind: input, shape index: {}]
  %s3 = inlined_call_operand.vmem [shape: f32[1,128], index: 3, kind: input, shape index: {}]
  %s4 = inlined_call_operand.hbm [shape: f32[2,128], index: 4, kind: output, shape index: {0}]
  %s5 = inlined_call_operand.hbm [shape: f32[2,8], index: 5, kind: output, shape index: {1}]
  %6 = xla_tuple %s4, %s5
  %s7 = sld [smem:[#allocation0]]
  $region42: #{tpu_custom_call.1} parent=0
    _
  %s9 = ssub.s32 1, %s7
  %s10 = scalar_select 0, %s9, %s7
  $region1: #{tpu_custom_call.1} parent=0
    #allocation2 [shape = 'u8[8192]{0}', space=vmem, size = 0x2000, scoped, tag = 'input window, operand 0, single buffered']
    #allocation3 [shape = 's32[1]{0}', space=sflag, size = 0x4, scoped, tag = 'scoped memory for tpu_custom_call.1']
    #allocation4 [shape = 's32[1]{0}', space=sflag, size = 0x4, scoped, tag = 'scoped memory for tpu_custom_call.1']
    #allocation5 [shape = 'u8[65536]{0}', space=vmem, size = 0x10000, scoped, tag = 'input window, operand 1, single buffered']
    #allocation6 [shape = 's32[1]{0}', space=sflag, size = 0x4, scoped, tag = 'scoped memory for tpu_custom_call.1']
    #allocation7 [shape = 'u8[1024]{0}', space=vmem, size = 0x400, scoped, tag = 'output window, operand 0, single buffered']
    #allocation8 [shape = 'u8[1024]{0}', space=vmem, size = 0x400, scoped, tag = 'output window, operand 1, single buffered']
    #allocation9 [shape = 's32[1]{0}', space=sflag, size = 0x4, scoped, tag = 'scoped memory for tpu_custom_call.1']
    %11 = vsyncpa [#allocation3], 0
    %12 = vsyncpa [#allocation6], 0
    %13 = vsyncpa [#allocation4], 0
    %14 = vsyncpa [#allocation9], 0
    // Predicated region
    $region2: #{tpu_custom_call.1} parent=1 // pred_check
      _
    $region3: #{tpu_custom_call.1} parent=1 // pred_check_branch
      %16 = sbr.rel (0) target = $region5
    $region4: #{tpu_custom_call.1} parent=1 // pred_region
      %s18 = ssub.s32 256, 256
      %19 = vsyncadd [#allocation3], %s18
      %s20 = sshll.u32 [#allocation2], 4
      %s21 = int_to_ptr.vmem [resolvable:$true] %s20
      %26 = dma.hbm_to_vmem [thread:$0]  %s0, 256, %s21, [#allocation3], 128, 128, 8
    $region5: #{tpu_custom_call.1} parent=1 // pred_fallthru
      _
    // Predicated region
    $region6: #{tpu_custom_call.1} parent=1 // pred_check
      _
    $region7: #{tpu_custom_call.1} parent=1 // pred_check_branch
      %28 = sbr.rel (0) target = $region9
    $region8: #{tpu_custom_call.1} parent=1 // pred_region
      %s30 = ssub.s32 2048, 2048
      %31 = vsyncadd [#allocation6], %s30
      %s32 = sshll.u32 [#allocation5], 4
      %s33 = int_to_ptr.vmem [resolvable:$true] %s32
      %38 = dma.hbm_to_vmem [thread:$0]  %s1, 2048, %s33, [#allocation6], 128, 128, 8
    $region9: #{tpu_custom_call.1} parent=1 // pred_fallthru
      _
    // Predicated region
    $region10: #{tpu_custom_call.1} parent=1 // pred_check
      _
    $region11: #{tpu_custom_call.1} parent=1 // pred_check_branch
      %40 = sbr.rel (0) target = $region13
    $region12: #{tpu_custom_call.1} parent=1 // pred_region
      _
    $region13: #{tpu_custom_call.1} parent=1 // pred_fallthru
      _
    // Predicated region
    $region14: #{tpu_custom_call.1} parent=1 // pred_check
      _
    $region15: #{tpu_custom_call.1} parent=1 // pred_check_branch
      %42 = sbr.rel (0) target = $region17
    $region16: #{tpu_custom_call.1} parent=1 // pred_region
      _
    $region17: #{tpu_custom_call.1} parent=1 // pred_fallthru
      _
    // Predicated region
    $region18: #{tpu_custom_call.1} parent=1 // pred_check
      _
    $region19: #{tpu_custom_call.1} parent=1 // pred_check_branch
      %44 = sbr.rel (0) target = $region21
    $region20: #{tpu_custom_call.1} parent=1 // pred_region
      %45 = dma.done [#allocation3], 256
    $region21: #{tpu_custom_call.1} parent=1 // pred_fallthru
      _
    // Predicated region
    $region22: #{tpu_custom_call.1} parent=1 // pred_check
      _
    $region23: #{tpu_custom_call.1} parent=1 // pred_check_branch
      %47 = sbr.rel (0) target = $region25
    $region24: #{tpu_custom_call.1} parent=1 // pred_region
      %48 = dma.done [#allocation6], 2048
    $region25: #{tpu_custom_call.1} parent=1 // pred_fallthru
      _
    %v49 = vld [vmem:[#allocation2] sm:$0xff]
    %v50 = vld [vmem:[#allocation2 + $0x8] sm:$0xff]
    %v51 = vld [vmem:[#allocation5] sm:$0xff]
    %v52 = vld [vmem:[#allocation5 + $0x8] sm:$0xff]
    %v53 = vld [vmem:[#allocation5 + $0x10] sm:$0xff]
    %v54 = vld [vmem:[#allocation5 + $0x18] sm:$0xff]
    %v55 = vld [vmem:[#allocation5 + $0x20] sm:$0xff]
    %v56 = vld [vmem:[#allocation5 + $0x28] sm:$0xff]
    %v57 = vld [vmem:[#allocation5 + $0x30] sm:$0xff]
    %v58 = vld [vmem:[#allocation5 + $0x38] sm:$0xff]
    %v59 = vld [vmem:[#allocation5 + $0x40] sm:$0xff]
    %v60 = vld [vmem:[#allocation5 + $0x48] sm:$0xff]
    %v61 = vld [vmem:[#allocation5 + $0x50] sm:$0xff]
    %v62 = vld [vmem:[#allocation5 + $0x58] sm:$0xff]
    %v63 = vld [vmem:[#allocation5 + $0x60] sm:$0xff]
    %v64 = vld [vmem:[#allocation5 + $0x68] sm:$0xff]
    %v65 = vld [vmem:[#allocation5 + $0x70] sm:$0xff]
    %v66 = vld [vmem:[#allocation5 + $0x78] sm:$0xff]
    %v67 = vld [vmem:[%s2] sm:$0x1]
    %v69 = vlaneseq
    %v70 = vshrl.u32 %v69, 7
    %v71 = vsub.s32 0, %v70
    %v72 = vrot.slane %v67, %v71
    %74 = vmatprep.subr.mxu0 0.0
    %75 = vmatpush1.msra.mxu0 %v51
    %76 = vmatprep.subr.mxu0 0.0
    %77 = vmatpush1.msra.mxu0 %v52
    %78 = vmatprep.subr.mxu0 0.0
    %79 = vmatpush1.msra.mxu0 %v53
    %80 = vmatprep.subr.mxu0 0.0
    %81 = vmatpush1.msra.mxu0 %v54
    %82 = vmatprep.subr.mxu0 0.0
    %83 = vmatpush1.msra.mxu0 %v55
    %84 = vmatprep.subr.mxu0 0.0
    %85 = vmatpush1.msra.mxu0 %v56
    %86 = vmatprep.subr.mxu0 0.0
    %87 = vmatpush1.msra.mxu0 %v57
    %88 = vmatprep.subr.mxu0 0.0
    %89 = vmatpush1.msra.mxu0 %v58
    %90 = vmatprep.subr.mxu0 0.0
    %91 = vmatpush1.msra.mxu0 %v59
    %92 = vmatprep.subr.mxu0 0.0
    %93 = vmatpush1.msra.mxu0 %v60
    %94 = vmatprep.subr.mxu0 0.0
    %95 = vmatpush1.msra.mxu0 %v61
    %96 = vmatprep.subr.mxu0 0.0
    %97 = vmatpush1.msra.mxu0 %v62
    %98 = vmatprep.subr.mxu0 0.0
    %99 = vmatpush1.msra.mxu0 %v63
    %100 = vmatprep.subr.mxu0 0.0
    %101 = vmatpush1.msra.mxu0 %v64
    %102 = vmatprep.subr.mxu0 0.0
    %103 = vmatpush1.msra.mxu0 %v65
    %104 = vmatprep.subr.mxu0 0.0
    %105 = vmatpush1.msra.mxu0 %v66
    %106 = vmatprep.subr.mxu0 0.0
    %107 = vmatpush1.msra.mxu0 0.0
    %108 = vmatprep.subr.mxu0 0.0
    %109 = vmatpush1.msra.mxu0 0.0
    %110 = vmatprep.subr.mxu0 0.0
    %111 = vmatpush1.msra.mxu0 0.0
    %112 = vmatprep.subr.mxu0 0.0
    %113 = vmatpush1.msra.mxu0 0.0
    %114 = vmatprep.subr.mxu0 0.0
    %115 = vmatpush1.msra.mxu0 0.0
    %116 = vmatprep.subr.mxu0 0.0
    %117 = vmatpush1.msra.mxu0 0.0
    %118 = vmatprep.subr.mxu0 0.0
    %119 = vmatpush1.msra.mxu0 0.0
    %120 = vmatprep.subr.mxu0 0.0
    %121 = vmatpush1.msra.mxu0 0.0
    %122 = vmatprep.subr.mxu0 0.0
    %123 = vmatpush1.msra.mxu0 0.0
    %124 = vmatprep.subr.mxu0 0.0
    %125 = vmatpush1.msra.mxu0 0.0
    %126 = vmatprep.subr.mxu0 0.0
    %127 = vmatpush1.msra.mxu0 0.0
    %128 = vmatprep.subr.mxu0 0.0
    %129 = vmatpush1.msra.mxu0 0.0
    %130 = vmatprep.subr.mxu0 0.0
    %131 = vmatpush1.msra.mxu0 0.0
    %132 = vmatprep.subr.mxu0 0.0
    %133 = vmatpush1.msra.mxu0 0.0
    %134 = vmatprep.subr.mxu0 0.0
    %135 = vmatpush1.msra.mxu0 0.0
    %136 = vmatprep.subr.mxu0 0.0
    %137 = vmatpush1.msra.mxu0 0.0
    %138 = vmatprep.mubr.f32.mxu0 0.0
    %139 = vmatmul.mubr.f32.gmra.mrb[0].mxu0 %v49
    %v140 = vpop.f32.mrb[0].mxu0
    %v141 = vadd.f32 %v72, %v140
    %v142 = vpop.f32.mrb[0].mxu0
    %143 = vmatprep.mubr.f32.mxu0 0.0
    %144 = vmatmul.mubr.f32.gmra.mrb[0].mxu0 %v50
    %v145 = vpop.f32.mrb[0].mxu0
    %v146 = vadd.f32 %v72, %v145
    %v147 = vpop.f32.mrb[0].mxu0
    %148 = vdwg.mxu0
    %v149 = vtanh.pop %v141
    %v150 = vtanh.pop %v146
    %v151 = vld [vmem:[%s3] sm:$0x1]
    %v153 = vlaneseq
    %v154 = vshrl.u32 %v153, 7
    %v155 = vsub.s32 0, %v154
    %v156 = vrot.slane %v151, %v155
    %v158 = vmul.f32 %v149, %v156
    %v159 = vmul.f32 %v150, %v156
    %160 = vadd.xlane.f32.xlu0 %v158
    %v161 = vpop.xlane.xlu0 %160
    %162 = vadd.xlane.f32.xlu0 %v159
    %v163 = vpop.xlane.xlu0 %162
    %v166 = vlaneseq
    %v167 = vand.u32 %v166, 127
    %v168 = vlaneseq
    %v169 = vshrl.u32 %v168, 7
    %v170 = vsub.s32 %v167, %v169
    %v171 = vrot.slane %v161, %v170
    %v172 = vlaneseq
    %v173 = vshrl.u32 %v172, 7
    %v174 = vsub.s32 %v167, %v173
    %v175 = vrot.slane %v163, %v174
    %vm176 = vcmask 1041409
    %v177 = vsel %vm176, %v175, %v171
    %vm179 = vcmask 58368
    %v180 = vsel %vm179, %v177, -inf
    %181 = vmax.xlane.f32.xlu0 %v180
    %v182 = vpop.xlane.xlu0 %181
    %v184 = vlaneseq
    %v185 = vshrl.u32 %v184, 7
    %v186 = vsub.s32 0, %v185
    %v187 = vrot.slane %v182, %v186
    %v188 = vlaneseq
    %v189 = vshrl.u32 %v188, 7
    %v190 = vsub.s32 1, %v189
    %v191 = vrot.slane %v182, %v190
    %v194 = vsub.f32 %v161, %v187
    %v195 = vsub.f32 %v163, %v191
    %v196 = vmul.f32 %v194, 1.442695
    %v197 = vpow.pop %v196
    %v198 = vmul.f32 %v195, 1.442695
    %v199 = vpow.pop %v198
    %202 = vset.pattern.permute.xlu0 0
    %203 = vperm.xlu0 %202, %v197
    %v204 = vpop.permute.xlu0 %203
    %205 = vset.pattern.permute.xlu0 0
    %206 = vperm.xlu0 %205, %v199
    %v207 = vpop.permute.xlu0 %206
    %v208 = vlaneseq
    %v209 = vshrl.u32 %v208, 7
    %v210 = vsub.s32 %v167, %v209
    %v211 = vrot.slane %v204, %v210
    %v212 = vlaneseq
    %v213 = vshrl.u32 %v212, 7
    %v214 = vsub.s32 %v167, %v213
    %v215 = vrot.slane %v207, %v214
    %v216 = vsel %vm176, %v215, %v211
    %v218 = vsel %vm179, %v216, 0.0
    %219 = vadd.xlane.f32.xlu0 %v218
    %v220 = vpop.xlane.xlu0 %219
    %v221 = vrcp.pop %v220
    %v223 = vlaneseq
    %v224 = vshrl.u32 %v223, 7
    %v225 = vsub.s32 0, %v224
    %v226 = vrot.slane %v221, %v225
    %v227 = vlaneseq
    %v228 = vshrl.u32 %v227, 7
    %v229 = vsub.s32 1, %v228
    %v230 = vrot.slane %v221, %v229
    %v233 = vmul.f32 %v197, %v226
    %v234 = vmul.f32 %v199, %v230
    %236 = vset.pattern.permute.xlu0 0
    %237 = vperm.xlu0 %236, %v233
    %v238 = vpop.permute.xlu0 %237
    %241 = vset.pattern.permute.xlu0 0
    %242 = vperm.xlu0 %241, %v234
    %v243 = vpop.permute.xlu0 %242
    %v245 = vmul.f32 %v238, %v49
    %v246 = vmul.f32 %v243, %v50
    %v247 = vrot.slane %v245, 4
    %v248 = vadd.f32 %v245, %v247
    %v249 = vrot.slane %v248, 2
    %v250 = vadd.f32 %v248, %v249
    %v251 = vrot.slane %v250, 1
    %v252 = vadd.f32 %v250, %v251
    %v253 = vrot.slane %v246, 4
    %v254 = vadd.f32 %v246, %v253
    %v255 = vrot.slane %v254, 2
    %v256 = vadd.f32 %v254, %v255
    %v257 = vrot.slane %v256, 1
    %v258 = vadd.f32 %v256, %v257
    %v261 = vsel %vm176, %v258, %v252
    %263 = vst [vmem:[#allocation7] sm:$0x3] %v261
    %v264 = vlaneseq
    %v265 = vshrl.u32 %v264, 7
    %v266 = vsub.s32 %v167, %v265
    %v267 = vrot.slane %v238, %v266
    %v268 = vlaneseq
    %v269 = vshrl.u32 %v268, 7
    %v270 = vsub.s32 %v167, %v269
    %v271 = vrot.slane %v243, %v270
    %v272 = vsel %vm176, %v271, %v267
    %274 = vst.msk [vmem:[#allocation8] sm:$0x3] %vm179, %v272
    // Predicated region
    $region26: #{tpu_custom_call.1} parent=1 // pred_check
      _
    $region27: #{tpu_custom_call.1} parent=1 // pred_check_branch
      %276 = sbr.rel (0) target = $region29
    $region28: #{tpu_custom_call.1} parent=1 // pred_region
      %s278 = ssub.s32 32, 32
      %279 = vsyncadd [#allocation4], %s278
      %s281 = sshll.u32 [#allocation7], 4
      %s282 = int_to_ptr.vmem [resolvable:$true] %s281
      %284 = dma.vmem_to_hbm [thread:$0]  %s282, 32, %s4, [#allocation4]
    $region29: #{tpu_custom_call.1} parent=1 // pred_fallthru
      _
    // Predicated region
    $region30: #{tpu_custom_call.1} parent=1 // pred_check
      _
    $region31: #{tpu_custom_call.1} parent=1 // pred_check_branch
      %286 = sbr.rel (0) target = $region33
    $region32: #{tpu_custom_call.1} parent=1 // pred_region
      %s288 = ssub.s32 32, 32
      %289 = vsyncadd [#allocation9], %s288
      %s291 = sshll.u32 [#allocation8], 4
      %s292 = int_to_ptr.vmem [resolvable:$true] %s291
      %294 = dma.vmem_to_hbm [thread:$0]  %s292, 32, %s5, [#allocation9]
    $region33: #{tpu_custom_call.1} parent=1 // pred_fallthru
      _
    // Predicated region
    $region34: #{tpu_custom_call.1} parent=1 // pred_check
      _
    $region35: #{tpu_custom_call.1} parent=1 // pred_check_branch
      %296 = sbr.rel (0) target = $region37
    $region36: #{tpu_custom_call.1} parent=1 // pred_region
      %297 = dma.done [#allocation4], 32
    $region37: #{tpu_custom_call.1} parent=1 // pred_fallthru
      _
    // Predicated region
    $region38: #{tpu_custom_call.1} parent=1 // pred_check
      _
    $region39: #{tpu_custom_call.1} parent=1 // pred_check_branch
      %299 = sbr.rel (0) target = $region41
    $region40: #{tpu_custom_call.1} parent=1 // pred_region
      %300 = dma.done [#allocation9], 32
    $region41: #{tpu_custom_call.1} parent=1 // pred_fallthru
      _
    %301 = vsyncpa [#allocation3], 1
    %302 = vsyncpa [#allocation6], 1
    %303 = vsyncpa [#allocation4], 1
    %304 = vsyncpa [#allocation9], 1

</llo_original>
